<compile_context>
chip_gen: v7x
topology: tpu7x:2x2x1
jax: 0.10.0
libtpu: 0.0.40
codegen_flags: <defaults>
</compile_context>

<pallas_src>
import math
import functools

import jax
import jax.numpy as jnp
from jax.experimental import pallas as pl
from jax.experimental.pallas import tpu as pltpu

_GELU_C = math.sqrt(2.0 / math.pi)


def _gelu(x):
    # GPT-2 tanh-approximation gelu (matches the torch reference).
    return 0.5 * x * (1.0 + jnp.tanh(_GELU_C * (x + 0.044715 * (x * x * x))))


def _round_up(x, m):
    return ((x + m - 1) // m) * m


def _vmem_capacity_bytes():
    try:
        return int(pltpu.get_tpu_info().vmem_capacity_bytes)
    except Exception:
        return 128 * 2**20  # conservative v5e/v6e default


def _is_v5e():
    try:
        kind = jax.devices()[0].device_kind.lower()
    except Exception:
        return False
    return ("v5 lite" in kind) or ("v5e" in kind) or ("v5lite" in kind)


def _mlp_kernel(x_ref, wfc_ref, bfc_ref, wproj_ref, bproj_ref, o_ref, *,
                epilogue_dtype):
    # x_ref:     (tm, nx)        input dtype tile (cast to bf16 in-kernel)
    # wfc_ref:   (nx, n_state)   compute dtype, resident across the grid
    # bfc_ref:   (1, n_state)    f32
    # wproj_ref: (n_state, nx)   compute dtype, resident across the grid
    # bproj_ref: (1, nx)         f32
    # o_ref:     (tm, nx)        output dtype (== input dtype)
    cdt = wfc_ref.dtype
    h = jnp.dot(x_ref[...].astype(cdt), wfc_ref[...],
                preferred_element_type=jnp.float32)
    h = (h + bfc_ref[...]).astype(epilogue_dtype)   # f32 bias add, then epilogue dtype
    h = _gelu(h)
    o = jnp.dot(h.astype(cdt), wproj_ref[...],
                preferred_element_type=jnp.float32)
    # TODO(synk): training-mode dropout (resid_pdrop) would be fused here via
    # pltpu.prng_seed / pltpu.prng_random_bits; eval-mode dropout is identity.
    o_ref[...] = (o + bproj_ref[...]).astype(o_ref.dtype)


def _resident_spec(shape, single_buffer):
    # Constant index_map -> block never changes across the grid; with
    # single_buffer we also drop the default double-buffering (halves VMEM).
    if single_buffer:
        return pl.BlockSpec(shape, lambda i: (0, 0),
                            pipeline_mode=pl.Buffered(1))
    return pl.BlockSpec(shape, lambda i: (0, 0))


@functools.partial(jax.jit,
                   static_argnames=("tm", "compute_dtype",
                                    "single_buffer_weights"))
def _mlp_forward_impl(x, w_fc, b_fc, w_proj, b_proj, *, tm, compute_dtype,
                      single_buffer_weights):
    B, T, nx = x.shape
    n_state = w_fc.shape[1]
    M = B * T

    # Row tile: large by default, clamped to a multiple of 16 (safe for both
    # 16- and 32-bit input/output packing) and to (roughly) M for tiny inputs.
    tm_eff = min(int(tm), _round_up(M, 16))
    tm_eff = max(16, _round_up(tm_eff, 16))
    grid_m = pl.cdiv(M, tm_eff)  # ragged final block is masked by Pallas

    # No wrapper-side cast / HBM pass over x: feed it in its native dtype.
    x2d = x.reshape(M, nx)
    # Weights: no-op casts when the caller already passes compute_dtype.
    w_fc_c = w_fc.astype(compute_dtype)
    w_proj_c = w_proj.astype(compute_dtype)
    b_fc2 = b_fc.reshape(1, n_state).astype(jnp.float32)
    b_proj2 = b_proj.reshape(1, nx).astype(jnp.float32)

    # Epilogue dtype: bf16 on v6e/v7x (bf16 VPU/EUP), f32 on v5e.
    epilogue_dtype = jnp.float32 if _is_v5e() else compute_dtype

    cw = jnp.dtype(compute_dtype).itemsize
    xb = jnp.dtype(x.dtype).itemsize
    ob = xb
    eb = jnp.dtype(epilogue_dtype).itemsize
    wbuf = 1 if single_buffer_weights else 2

    vmem_need = (
        wbuf * 2 * nx * n_state * cw        # W_fc + W_proj panels
        + wbuf * (n_state + nx) * 4         # biases (f32)
        + 2 * tm_eff * nx * xb              # double-buffered x tiles
        + 2 * tm_eff * nx * ob              # double-buffered out tiles
        + tm_eff * nx * cw                  # in-kernel bf16 copy of x tile
        + tm_eff * n_state * 4              # f32 first-matmul result
        + tm_eff * n_state * eb             # gelu epilogue copy
    )
    vmem_cap = _vmem_capacity_bytes()
    vmem_limit = max(int(vmem_need * 1.25) + (4 << 20), 32 << 20)
    vmem_limit = min(vmem_limit, vmem_cap - (2 << 20))
    vmem_limit = max(vmem_limit, int(vmem_need))  # never below real footprint

    cost = pl.CostEstimate(
        flops=4 * M * nx * n_state,                     # two matmuls
        transcendentals=M * n_state,                    # tanh in gelu
        bytes_accessed=(M * nx * xb                     # x in
                        + 2 * nx * n_state * cw         # weights
                        + (nx + n_state) * 4            # biases
                        + M * nx * ob),                 # out
    )

    kernel = functools.partial(_mlp_kernel, epilogue_dtype=epilogue_dtype)

    out2d = pl.pallas_call(
        kernel,
        out_shape=jax.ShapeDtypeStruct((M, nx), x.dtype),
        grid_spec=pltpu.PrefetchScalarGridSpec(
            num_scalar_prefetch=0,
            grid=(grid_m,),
            in_specs=[
                pl.BlockSpec((tm_eff, nx), lambda i: (i, 0)),          # x tile
                _resident_spec((nx, n_state), single_buffer_weights),  # W_fc
                _resident_spec((1, n_state), single_buffer_weights),   # b_fc
                _resident_spec((n_state, nx), single_buffer_weights),  # W_proj
                _resident_spec((1, nx), single_buffer_weights),        # b_proj
            ],
            out_specs=pl.BlockSpec((tm_eff, nx), lambda i: (i, 0)),
        ),
        compiler_params=pltpu.CompilerParams(
            dimension_semantics=("parallel",),
            vmem_limit_bytes=int(vmem_limit),
        ),
        cost_estimate=cost,
    )(x2d, w_fc_c, b_fc2, w_proj_c, b_proj2)

    return out2d.reshape(B, T, nx)


# Lazily resolved: whether pl.Buffered(1) on resident specs is supported by
# the installed Pallas; fall back to default double-buffering otherwise so
# the kernel always compiles and runs.
_SINGLE_BUFFER_WEIGHTS_OK = None


def mlp_forward(x, w_fc, b_fc, w_proj, b_proj, *, tm=512,
                compute_dtype=jnp.bfloat16):
    """GPT-2 MLP: dropout(c_proj(gelu(c_fc(x)))), dropout = identity (eval)."""
    global _SINGLE_BUFFER_WEIGHTS_OK
    if _SINGLE_BUFFER_WEIGHTS_OK is None:
        try:
            out = _mlp_forward_impl(x, w_fc, b_fc, w_proj, b_proj, tm=tm,
                                    compute_dtype=compute_dtype,
                                    single_buffer_weights=True)
            jax.block_until_ready(out)
            _SINGLE_BUFFER_WEIGHTS_OK = True
            return out
        except Exception:
            _SINGLE_BUFFER_WEIGHTS_OK = False
    return _mlp_forward_impl(x, w_fc, b_fc, w_proj, b_proj, tm=tm,
                             compute_dtype=compute_dtype,
                             single_buffer_weights=_SINGLE_BUFFER_WEIGHTS_OK)


def _gelu_f32(x):
    return 0.5 * x * (1.0 + jnp.tanh(_GELU_C * (x + 0.044715 * x * x * x)))


def _reference(x, w_fc, b_fc, w_proj, b_proj):
    h = _gelu_f32(jnp.einsum("btd,dh->bth", x.astype(jnp.float32),
                             w_fc.astype(jnp.float32)) + b_fc)
    o = jnp.einsum("bth,hd->btd", h, w_proj.astype(jnp.float32)) + b_proj
    return o.astype(x.dtype)


if __name__ == "__main__":
    # Small GPT-2-like config: n_embd = 32, n_state = 4 * n_embd = 128.
    B, T, n_embd = 2, 8, 32
    n_state = 4 * n_embd

    key = jax.random.PRNGKey(0)
    kx, kwf, kbf, kwp, kbp = jax.random.split(key, 5)

    x = jax.random.normal(kx, (B, T, n_embd), dtype=jnp.float32)
    # Conv1D init in GPT-2: weight ~ N(0, 0.02); small random biases to
    # exercise broadcasting.
    w_fc = 0.02 * jax.random.normal(kwf, (n_embd, n_state), dtype=jnp.float32)
    b_fc = 0.01 * jax.random.normal(kbf, (n_state,), dtype=jnp.float32)
    w_proj = 0.02 * jax.random.normal(kwp, (n_state, n_embd), dtype=jnp.float32)
    b_proj = 0.01 * jax.random.normal(kbp, (n_embd,), dtype=jnp.float32)

    # Pre-cast the weights to the matmul dtype once, outside the per-call
    # (jitted) path, so no per-call HBM cast pass is emitted.
    w_fc_c = w_fc.astype(jnp.bfloat16)
    w_proj_c = w_proj.astype(jnp.bfloat16)

    out = mlp_forward(x, w_fc_c, b_fc, w_proj_c, b_proj)
    out = jax.block_until_ready(out)

    ref = _reference(x, w_fc, b_fc, w_proj, b_proj)
    assert out.shape == (B, T, n_embd)
    # bf16 matmul operands / epilogue with f32 accumulation vs f32 reference.
    assert jnp.allclose(out, ref, atol=1e-2, rtol=1e-2), "mismatch vs reference"

    print("KERNEL_OK")
</pallas_src>

<mosaic_0001>
module attributes {stable_mosaic.version = 11 : i64} {
  func.func @_mlp_kernel(%arg0: i32, %arg1: memref<16x32xf32, #tpu.memory_space<vmem>>, %arg2: memref<32x128xbf16, #tpu.memory_space<vmem>>, %arg3: memref<1x128xf32, #tpu.memory_space<vmem>>, %arg4: memref<128x32xbf16, #tpu.memory_space<vmem>>, %arg5: memref<1x32xf32, #tpu.memory_space<vmem>>, %arg6: memref<16x32xf32, #tpu.memory_space<vmem>>) attributes {dimension_semantics = [#tpu.dimension_semantics<parallel>], iteration_bounds = array<i64: 1>, scalar_prefetch = 0 : i64, scratch_operands = 0 : i64, tpu.core_type = #tpu.core_type<tc>, window_params = [{transform_indices = @transform_0, window_bounds = array<i64: 16, 32>}, {pipeline_mode = #tpu.pipeline_mode<synchronous>, transform_indices = @transform_1, window_bounds = array<i64: 32, 128>}, {pipeline_mode = #tpu.pipeline_mode<synchronous>, transform_indices = @transform_2, window_bounds = array<i64: 1, 128>}, {pipeline_mode = #tpu.pipeline_mode<synchronous>, transform_indices = @transform_3, window_bounds = array<i64: 128, 32>}, {pipeline_mode = #tpu.pipeline_mode<synchronous>, transform_indices = @transform_4, window_bounds = array<i64: 1, 32>}, {transform_indices = @transform_5, window_bounds = array<i64: 16, 32>}]} {
    %c0 = arith.constant 0 : index
    %c0_0 = arith.constant 0 : index
    %0 = vector.load %arg1[%c0, %c0_0] : memref<16x32xf32, #tpu.memory_space<vmem>>, vector<16x32xf32>
    %1 = arith.truncf %0 : vector<16x32xf32> to vector<16x32xbf16>
    %c0_1 = arith.constant 0 : index
    %c0_2 = arith.constant 0 : index
    %2 = vector.load %arg2[%c0_1, %c0_2] : memref<32x128xbf16, #tpu.memory_space<vmem>>, vector<32x128xbf16>
    %cst = arith.constant dense<0.000000e+00> : vector<16x128xf32>
    %3 = tpu.matmul %1, %2, %cst {dimension_numbers = #tpu.dot_dimension_numbers<[1], [0], [0], [1], [0, 0, 1, 1], [], []>} : vector<16x32xbf16>, vector<32x128xbf16>, vector<16x128xf32> -> vector<16x128xf32>
    %c0_3 = arith.constant 0 : index
    %c0_4 = arith.constant 0 : index
    %4 = vector.load %arg3[%c0_3, %c0_4] : memref<1x128xf32, #tpu.memory_space<vmem>>, vector<1x128xf32>
    %5 = vector.broadcast %4 : vector<1x128xf32> to vector<16x128xf32>
    %6 = arith.addf %3, %5 : vector<16x128xf32>
    %7 = arith.truncf %6 : vector<16x128xf32> to vector<16x128xbf16>
    %cst_5 = arith.constant 5.000000e-01 : bf16
    %8 = vector.broadcast %cst_5 : bf16 to vector<16x128xbf16>
    %9 = arith.mulf %8, %7 : vector<16x128xbf16>
    %10 = arith.mulf %7, %7 : vector<16x128xbf16>
    %11 = arith.mulf %10, %7 : vector<16x128xbf16>
    %cst_6 = arith.constant 4.467770e-02 : bf16
    %12 = vector.broadcast %cst_6 : bf16 to vector<16x128xbf16>
    %13 = arith.mulf %12, %11 : vector<16x128xbf16>
    %14 = arith.addf %7, %13 : vector<16x128xbf16>
    %cst_7 = arith.constant 7.968750e-01 : bf16
    %15 = vector.broadcast %cst_7 : bf16 to vector<16x128xbf16>
    %16 = arith.mulf %15, %14 : vector<16x128xbf16>
    %17 = math.tanh %16 : vector<16x128xbf16>
    %cst_8 = arith.constant 1.000000e+00 : bf16
    %18 = vector.broadcast %cst_8 : bf16 to vector<16x128xbf16>
    %19 = arith.addf %18, %17 : vector<16x128xbf16>
    %20 = arith.mulf %9, %19 : vector<16x128xbf16>
    %c0_9 = arith.constant 0 : index
    %c0_10 = arith.constant 0 : index
    %21 = vector.load %arg4[%c0_9, %c0_10] : memref<128x32xbf16, #tpu.memory_space<vmem>>, vector<128x32xbf16>
    %cst_11 = arith.constant dense<0.000000e+00> : vector<16x32xf32>
    %22 = tpu.matmul %20, %21, %cst_11 {dimension_numbers = #tpu.dot_dimension_numbers<[1], [0], [0], [1], [0, 0, 1, 1], [], []>} : vector<16x128xbf16>, vector<128x32xbf16>, vector<16x32xf32> -> vector<16x32xf32>
    %c0_12 = arith.constant 0 : index
    %c0_13 = arith.constant 0 : index
    %23 = vector.load %arg5[%c0_12, %c0_13] : memref<1x32xf32, #tpu.memory_space<vmem>>, vector<1x32xf32>
    %24 = vector.broadcast %23 : vector<1x32xf32> to vector<16x32xf32>
    %25 = arith.addf %22, %24 : vector<16x32xf32>
    %c0_14 = arith.constant 0 : index
    %c0_15 = arith.constant 0 : index
    %26 = vector.load %arg6[%c0_14, %c0_15] : memref<16x32xf32, #tpu.memory_space<vmem>>, vector<16x32xf32>
    tpu.vector_store %arg6[%c0_14, %c0_15], %25 {strides = array<i32>} : memref<16x32xf32, #tpu.memory_space<vmem>>, vector<16x32xf32>,
    return
  }
  func.func @transform_0(%arg0: i32) -> (i32, i32) {
    %c0_i32 = arith.constant 0 : i32
    %c0_i32_0 = arith.constant 0 : i32
    return %arg0, %c0_i32 : i32, i32
  }
  func.func @transform_1(%arg0: i32) -> (i32, i32) {
    %c0_i32 = arith.constant 0 : i32
    %c0_i32_0 = arith.constant 0 : i32
    %c0_i32_1 = arith.constant 0 : i32
    return %c0_i32, %c0_i32_0 : i32, i32
  }
  func.func @transform_2(%arg0: i32) -> (i32, i32) {
    %c0_i32 = arith.constant 0 : i32
    %c0_i32_0 = arith.constant 0 : i32
    %c0_i32_1 = arith.constant 0 : i32
    return %c0_i32, %c0_i32_0 : i32, i32
  }
  func.func @transform_3(%arg0: i32) -> (i32, i32) {
    %c0_i32 = arith.constant 0 : i32
    %c0_i32_0 = arith.constant 0 : i32
    %c0_i32_1 = arith.constant 0 : i32
    return %c0_i32, %c0_i32_0 : i32, i32
  }
  func.func @transform_4(%arg0: i32) -> (i32, i32) {
    %c0_i32 = arith.constant 0 : i32
    %c0_i32_0 = arith.constant 0 : i32
    %c0_i32_1 = arith.constant 0 : i32
    return %c0_i32, %c0_i32_0 : i32, i32
  }
  func.func @transform_5(%arg0: i32) -> (i32, i32) {
    %c0_i32 = arith.constant 0 : i32
    %c0_i32_0 = arith.constant 0 : i32
    return %arg0, %c0_i32 : i32, i32
  }
}

module attributes {stable_mosaic.version = 11 : i64} {
  func.func @_mlp_kernel(%arg0: i32, %arg1: memref<16x32xf32, #tpu.memory_space<vmem>>, %arg2: memref<32x128xbf16, #tpu.memory_space<vmem>>, %arg3: memref<1x128xf32, #tpu.memory_space<vmem>>, %arg4: memref<128x32xbf16, #tpu.memory_space<vmem>>, %arg5: memref<1x32xf32, #tpu.memory_space<vmem>>, %arg6: memref<16x32xf32, #tpu.memory_space<vmem>>) attributes {dimension_semantics = [#tpu.dimension_semantics<parallel>], iteration_bounds = array<i64: 1>, scalar_prefetch = 0 : i64, scratch_operands = 0 : i64, tpu.core_type = #tpu.core_type<tc>, window_params = [{transform_indices = @transform_0, window_bounds = array<i64: 16, 32>}, {pipeline_mode = #tpu.pipeline_mode<synchronous>, transform_indices = @transform_1, window_bounds = array<i64: 32, 128>}, {pipeline_mode = #tpu.pipeline_mode<synchronous>, transform_indices = @transform_2, window_bounds = array<i64: 1, 128>}, {pipeline_mode = #tpu.pipeline_mode<synchronous>, transform_indices = @transform_3, window_bounds = array<i64: 128, 32>}, {pipeline_mode = #tpu.pipeline_mode<synchronous>, transform_indices = @transform_4, window_bounds = array<i64: 1, 32>}, {transform_indices = @transform_5, window_bounds = array<i64: 16, 32>}]} {
    %c0 = arith.constant 0 : index
    %c0_0 = arith.constant 0 : index
    %0 = vector.load %arg1[%c0, %c0_0] : memref<16x32xf32, #tpu.memory_space<vmem>>, vector<16x32xf32>
    %1 = arith.truncf %0 : vector<16x32xf32> to vector<16x32xbf16>
    %c0_1 = arith.constant 0 : index
    %c0_2 = arith.constant 0 : index
    %2 = vector.load %arg2[%c0_1, %c0_2] : memref<32x128xbf16, #tpu.memory_space<vmem>>, vector<32x128xbf16>
    %cst = arith.constant dense<0.000000e+00> : vector<16x128xf32>
    %3 = tpu.matmul %1, %2, %cst {dimension_numbers = #tpu.dot_dimension_numbers<[1], [0], [0], [1], [0, 0, 1, 1], [], []>} : vector<16x32xbf16>, vector<32x128xbf16>, vector<16x128xf32> -> vector<16x128xf32>
    %c0_3 = arith.constant 0 : index
    %c0_4 = arith.constant 0 : index
    %4 = vector.load %arg3[%c0_3, %c0_4] : memref<1x128xf32, #tpu.memory_space<vmem>>, vector<1x128xf32>
    %5 = vector.broadcast %4 : vector<1x128xf32> to vector<16x128xf32>
    %6 = arith.addf %3, %5 : vector<16x128xf32>
    %7 = arith.truncf %6 : vector<16x128xf32> to vector<16x128xbf16>
    %cst_5 = arith.constant 5.000000e-01 : bf16
    %8 = vector.broadcast %cst_5 : bf16 to vector<16x128xbf16>
    %9 = arith.mulf %8, %7 : vector<16x128xbf16>
    %10 = arith.mulf %7, %7 : vector<16x128xbf16>
    %11 = arith.mulf %10, %7 : vector<16x128xbf16>
    %cst_6 = arith.constant 4.467770e-02 : bf16
    %12 = vector.broadcast %cst_6 : bf16 to vector<16x128xbf16>
    %13 = arith.mulf %12, %11 : vector<16x128xbf16>
    %14 = arith.addf %7, %13 : vector<16x128xbf16>
    %cst_7 = arith.constant 7.968750e-01 : bf16
    %15 = vector.broadcast %cst_7 : bf16 to vector<16x128xbf16>
    %16 = arith.mulf %15, %14 : vector<16x128xbf16>
    %17 = math.tanh %16 : vector<16x128xbf16>
    %cst_8 = arith.constant 1.000000e+00 : bf16
    %18 = vector.broadcast %cst_8 : bf16 to vector<16x128xbf16>
    %19 = arith.addf %18, %17 : vector<16x128xbf16>
    %20 = arith.mulf %9, %19 : vector<16x128xbf16>
    %c0_9 = arith.constant 0 : index
    %c0_10 = arith.constant 0 : index
    %21 = vector.load %arg4[%c0_9, %c0_10] : memref<128x32xbf16, #tpu.memory_space<vmem>>, vector<128x32xbf16>
    %cst_11 = arith.constant dense<0.000000e+00> : vector<16x32xf32>
    %22 = tpu.matmul %20, %21, %cst_11 {dimension_numbers = #tpu.dot_dimension_numbers<[1], [0], [0], [1], [0, 0, 1, 1], [], []>} : vector<16x128xbf16>, vector<128x32xbf16>, vector<16x32xf32> -> vector<16x32xf32>
    %c0_12 = arith.constant 0 : index
    %c0_13 = arith.constant 0 : index
    %23 = vector.load %arg5[%c0_12, %c0_13] : memref<1x32xf32, #tpu.memory_space<vmem>>, vector<1x32xf32>
    %24 = vector.broadcast %23 : vector<1x32xf32> to vector<16x32xf32>
    %25 = arith.addf %22, %24 : vector<16x32xf32>
    %c0_14 = arith.constant 0 : index
    %c0_15 = arith.constant 0 : index
    %26 = vector.load %arg6[%c0_14, %c0_15] : memref<16x32xf32, #tpu.memory_space<vmem>>, vector<16x32xf32>
    tpu.vector_store %arg6[%c0_14, %c0_15], %25 {strides = array<i32>} : memref<16x32xf32, #tpu.memory_space<vmem>>, vector<16x32xf32>,
    return
  }
  func.func @transform_0(%arg0: i32) -> (i32, i32) {
    %c0_i32 = arith.constant 0 : i32
    %c0_i32_0 = arith.constant 0 : i32
    return %arg0, %c0_i32 : i32, i32
  }
  func.func @transform_1(%arg0: i32) -> (i32, i32) {
    %c0_i32 = arith.constant 0 : i32
    %c0_i32_0 = arith.constant 0 : i32
    %c0_i32_1 = arith.constant 0 : i32
    return %c0_i32, %c0_i32_0 : i32, i32
  }
  func.func @transform_2(%arg0: i32) -> (i32, i32) {
    %c0_i32 = arith.constant 0 : i32
    %c0_i32_0 = arith.constant 0 : i32
    %c0_i32_1 = arith.constant 0 : i32
    return %c0_i32, %c0_i32_0 : i32, i32
  }
  func.func @transform_3(%arg0: i32) -> (i32, i32) {
    %c0_i32 = arith.constant 0 : i32
    %c0_i32_0 = arith.constant 0 : i32
    %c0_i32_1 = arith.constant 0 : i32
    return %c0_i32, %c0_i32_0 : i32, i32
  }
  func.func @transform_4(%arg0: i32) -> (i32, i32) {
    %c0_i32 = arith.constant 0 : i32
    %c0_i32_0 = arith.constant 0 : i32
    %c0_i32_1 = arith.constant 0 : i32
    return %c0_i32, %c0_i32_0 : i32, i32
  }
  func.func @transform_5(%arg0: i32) -> (i32, i32) {
    %c0_i32 = arith.constant 0 : i32
    %c0_i32_0 = arith.constant 0 : i32
    return %arg0, %c0_i32 : i32, i32
  }
}

</mosaic_0001>

<llo_original>
// kernel: _mlp_forward_impl.1
$region0: #{_mlp_forward_impl.1}
  #allocation0 [shape = 'u32[]', space=smem, size = 0x4, offset = 0x4, fixed_abs, tag = 'smem constant byte address 0x4 - core index']
  #allocation1 [shape = 'u32[144,128]{1,0:T(1,128)}', space=vmem, size = 0x12000, scoped, tag = 'internal scratch']
  %s0 = inlined_call_operand.vmem [shape: f32[16,32], index: 0, kind: input, shape index: {}]
  %s1 = inlined_call_operand.vmem [shape: bf16[32,128], index: 1, kind: input, shape index: {}]
  %s2 = inlined_call_operand.vmem [shape: f32[1,128], index: 2, kind: input, shape index: {}]
  %s3 = inlined_call_operand.vmem [shape: bf16[128,32], index: 3, kind: input, shape index: {}]
  %s4 = inlined_call_operand.vmem [shape: f32[1,32], index: 4, kind: input, shape index: {}]
  %s5 = inlined_call_operand.hbm [shape: f32[16,32], index: 5, kind: output, shape index: {}]
  %s6 = sld [smem:[#allocation0]]
  $region30: #{_mlp_forward_impl.1} parent=0
    _
  %s8 = ssub.s32 1, %s6
  %s9 = scalar_select 0, %s8, %s6
  $region1: #{_mlp_forward_impl.1} parent=0
    #allocation2 [shape = 'u8[8192]{0}', space=vmem, size = 0x2000, scoped, tag = 'output window, operand 0, single buffered']
    #allocation3 [shape = 's32[1]{0}', space=sflag, size = 0x4, scoped, tag = 'scoped memory for _mlp_forward_impl.1']
    %10 = vsyncpa [#allocation3], 0
    // Predicated region
    $region2: #{_mlp_forward_impl.1} parent=1 // pred_check
      _
    $region3: #{_mlp_forward_impl.1} parent=1 // pred_check_branch
      %12 = sbr.rel (0) target = $region5
    $region4: #{_mlp_forward_impl.1} parent=1 // pred_region
      _
    $region5: #{_mlp_forward_impl.1} parent=1 // pred_fallthru
      _
    // Predicated region
    $region6: #{_mlp_forward_impl.1} parent=1 // pred_check
      _
    $region7: #{_mlp_forward_impl.1} parent=1 // pred_check_branch
      %14 = sbr.rel (0) target = $region9
    $region8: #{_mlp_forward_impl.1} parent=1 // pred_region
      _
    $region9: #{_mlp_forward_impl.1} parent=1 // pred_fallthru
      _
    // Predicated region
    $region10: #{_mlp_forward_impl.1} parent=1 // pred_check
      _
    $region11: #{_mlp_forward_impl.1} parent=1 // pred_check_branch
      %16 = sbr.rel (0) target = $region13
    $region12: #{_mlp_forward_impl.1} parent=1 // pred_region
      _
    $region13: #{_mlp_forward_impl.1} parent=1 // pred_fallthru
      _
    // Predicated region
    $region14: #{_mlp_forward_impl.1} parent=1 // pred_check
      _
    $region15: #{_mlp_forward_impl.1} parent=1 // pred_check_branch
      %18 = sbr.rel (0) target = $region17
    $region16: #{_mlp_forward_impl.1} parent=1 // pred_region
      _
    $region17: #{_mlp_forward_impl.1} parent=1 // pred_fallthru
      _
    // Predicated region
    $region18: #{_mlp_forward_impl.1} parent=1 // pred_check
      _
    $region19: #{_mlp_forward_impl.1} parent=1 // pred_check_branch
      %20 = sbr.rel (0) target = $region21
    $region20: #{_mlp_forward_impl.1} parent=1 // pred_region
      _
    $region21: #{_mlp_forward_impl.1} parent=1 // pred_fallthru
      _
    %v26 = vld [vmem:[%s0] sm:$0xff]
    %v27 = vld [vmem:[%s0 + $0x8] sm:$0xff]
    %v28 = vpack.c.bf16 %v27, %v26
    %v29 = vld [vmem:[%s1] sm:$0xf]
    %v30 = vld [vmem:[%s1 + $0x4] sm:$0xf]
    %v31 = vld [vmem:[%s1 + $0x8] sm:$0xf]
    %v32 = vld [vmem:[%s1 + $0xc] sm:$0xf]
    %v33 = vld [vmem:[%s2] sm:$0x1]
    %v35 = vlaneseq
    %v36 = vshrl.u32 %v35, 7
    %v37 = vsub.s32 0, %v36
    %v38 = vrot.slane %v33, %v37
    %v44 = vunpack.c.l.b16 %v29
    %v45 = vunpack.c.l.b16 %v30
    %v46 = vunpack.c.l.b16 %v31
    %v47 = vunpack.c.l.b16 %v32
    %v48 = vpack.c.b16 %v45, %v44
    %v49 = vpack.c.b16 %v47, %v46
    %vm52 = vcmask 261120
    %v54 = vsel %vm52, %v28, 0
    %56 = vmatprep.subr.bf16.mxu0 0
    %57 = vmatpush1.bf16.msra.mxu0 %v48
    %58 = vmatprep.subr.bf16.mxu0 0
    %59 = vmatpush1.bf16.msra.mxu0 %v49
    %60 = vmatprep.subr.bf16.mxu0 0
    %61 = vmatpush1.bf16.msra.mxu0 0
    %62 = vmatprep.subr.bf16.mxu0 0
    %63 = vmatpush1.bf16.msra.mxu0 0
    %64 = vmatprep.subr.bf16.mxu0 0
    %65 = vmatpush1.bf16.msra.mxu0 0
    %66 = vmatprep.subr.bf16.mxu0 0
    %67 = vmatpush1.bf16.msra.mxu0 0
    %68 = vmatprep.subr.bf16.mxu0 0
    %69 = vmatpush1.bf16.msra.mxu0 0
    %70 = vmatprep.subr.bf16.mxu0 0
    %71 = vmatpush1.bf16.msra.mxu0 0
    %72 = vmatprep.subr.bf16.mxu0 0
    %73 = vmatpush1.bf16.msra.mxu0 0
    %74 = vmatprep.subr.bf16.mxu0 0
    %75 = vmatpush1.bf16.msra.mxu0 0
    %76 = vmatprep.subr.bf16.mxu0 0
    %77 = vmatpush1.bf16.msra.mxu0 0
    %78 = vmatprep.subr.bf16.mxu0 0
    %79 = vmatpush1.bf16.msra.mxu0 0
    %80 = vmatprep.subr.bf16.mxu0 0
    %81 = vmatpush1.bf16.msra.mxu0 0
    %82 = vmatprep.subr.bf16.mxu0 0
    %83 = vmatpush1.bf16.msra.mxu0 0
    %84 = vmatprep.subr.bf16.mxu0 0
    %85 = vmatpush1.bf16.msra.mxu0 0
    %86 = vmatprep.subr.bf16.mxu0 0
    %87 = vmatpush1.bf16.msra.mxu0 0
    %88 = vmatprep.mubr.bf16.mxu0 0
    %89 = vmatmul.mubr.bf16.gmra.mrb[0].mxu0 %v54
    %v90 = vpop.f32.mrb[0].mxu0
    %v91 = vadd.f32 %v38, %v90
    %v92 = vpop.f32.mrb[0].mxu0
    %v93 = vpop.f32.mrb[0].mxu0
    %v94 = vadd.f32 %v38, %v93
    %v95 = vpop.f32.mrb[0].mxu0
    %96 = vdwg.mxu0
    %v97 = vpack.c.bf16 %v94, %v91
    %v98 = vmul.bf16 %v97, 1056980736
    %v99 = vmul.bf16 %v97, %v97
    %v100 = vmul.bf16 %v99, %v97
    %v101 = vmul.bf16 %v100, 1027030327
    %v102 = vadd.bf16 %v97, %v101
    %v103 = vmul.bf16 %v102, 1061961548
    %v104 = vtanh.bf16.pop %v103
    %v105 = vadd.bf16 %v104, 1065369472
    %v106 = vmul.bf16 %v98, %v105
    %v107 = vld [vmem:[%s3] sm:$0xf]
    %v108 = vld [vmem:[%s3 + $0x4] sm:$0xf]
    %v109 = vld [vmem:[%s3 + $0x8] sm:$0xf]
    %v110 = vld [vmem:[%s3 + $0xc] sm:$0xf]
    %v111 = vld [vmem:[%s3 + $0x10] sm:$0xf]
    %v112 = vld [vmem:[%s3 + $0x14] sm:$0xf]
    %v113 = vld [vmem:[%s3 + $0x18] sm:$0xf]
    %v114 = vld [vmem:[%s3 + $0x1c] sm:$0xf]
    %v115 = vld [vmem:[%s3 + $0x20] sm:$0xf]
    %v116 = vld [vmem:[%s3 + $0x24] sm:$0xf]
    %v117 = vld [vmem:[%s3 + $0x28] sm:$0xf]
    %v118 = vld [vmem:[%s3 + $0x2c] sm:$0xf]
    %v119 = vld [vmem:[%s3 + $0x30] sm:$0xf]
    %v120 = vld [vmem:[%s3 + $0x34] sm:$0xf]
    %v121 = vld [vmem:[%s3 + $0x38] sm:$0xf]
    %v122 = vld [vmem:[%s3 + $0x3c] sm:$0xf]
    %v123 = vld [vmem:[%s4] sm:$0x1]
    %v125 = vlaneseq
    %v126 = vshrl.u32 %v125, 7
    %v127 = vsub.s32 0, %v126
    %v128 = vrot.slane %v123, %v127
    %v146 = vunpack.c.l.b16 %v107
    %v147 = vunpack.c.l.b16 %v108
    %v148 = vunpack.c.l.b16 %v109
    %v149 = vunpack.c.l.b16 %v110
    %v150 = vunpack.c.l.b16 %v111
    %v151 = vunpack.c.l.b16 %v112
    %v152 = vunpack.c.l.b16 %v113
    %v153 = vunpack.c.l.b16 %v114
    %v154 = vunpack.c.l.b16 %v115
    %v155 = vunpack.c.l.b16 %v116
    %v156 = vunpack.c.l.b16 %v117
    %v157 = vunpack.c.l.b16 %v118
    %v158 = vunpack.c.l.b16 %v119
    %v159 = vunpack.c.l.b16 %v120
    %v160 = vunpack.c.l.b16 %v121
    %v161 = vunpack.c.l.b16 %v122
    %v162 = vpack.c.b16 %v147, %v146
    %v163 = vpack.c.b16 %v149, %v148
    %v164 = vpack.c.b16 %v151, %v150
    %v165 = vpack.c.b16 %v153, %v152
    %v166 = vpack.c.b16 %v155, %v154
    %v167 = vpack.c.b16 %v157, %v156
    %v168 = vpack.c.b16 %v159, %v158
    %v169 = vpack.c.b16 %v161, %v160
    %178 = vmatprep.subr.bf16.mxu0 0
    %179 = vmatpush1.bf16.msra.mxu0 %v162
    %180 = vmatprep.subr.bf16.mxu0 0
    %181 = vmatpush1.bf16.msra.mxu0 %v163
    %182 = vmatprep.subr.bf16.mxu0 0
    %183 = vmatpush1.bf16.msra.mxu0 %v164
    %184 = vmatprep.subr.bf16.mxu0 0
    %185 = vmatpush1.bf16.msra.mxu0 %v165
    %186 = vmatprep.subr.bf16.mxu0 0
    %187 = vmatpush1.bf16.msra.mxu0 %v166
    %188 = vmatprep.subr.bf16.mxu0 0
    %189 = vmatpush1.bf16.msra.mxu0 %v167
    %190 = vmatprep.subr.bf16.mxu0 0
    %191 = vmatpush1.bf16.msra.mxu0 %v168
    %192 = vmatprep.subr.bf16.mxu0 0
    %193 = vmatpush1.bf16.msra.mxu0 %v169
    %194 = vmatprep.subr.bf16.mxu0 0
    %195 = vmatpush1.bf16.msra.mxu0 0
    %196 = vmatprep.subr.bf16.mxu0 0
    %197 = vmatpush1.bf16.msra.mxu0 0
    %198 = vmatprep.subr.bf16.mxu0 0
    %199 = vmatpush1.bf16.msra.mxu0 0
    %200 = vmatprep.subr.bf16.mxu0 0
    %201 = vmatpush1.bf16.msra.mxu0 0
    %202 = vmatprep.subr.bf16.mxu0 0
    %203 = vmatpush1.bf16.msra.mxu0 0
    %204 = vmatprep.subr.bf16.mxu0 0
    %205 = vmatpush1.bf16.msra.mxu0 0
    %206 = vmatprep.subr.bf16.mxu0 0
    %207 = vmatpush1.bf16.msra.mxu0 0
    %208 = vmatprep.subr.bf16.mxu0 0
    %209 = vmatpush1.bf16.msra.mxu0 0
    %210 = vmatprep.mubr.bf16.mxu0 0
    %211 = vmatmul.mubr.bf16.gmra.mrb[0].mxu0 %v106
    %v212 = vpop.f32.mrb[0].mxu0
    %v213 = vadd.f32 %v128, %v212
    %v214 = vpop.f32.mrb[0].mxu0
    %v215 = vpop.f32.mrb[0].mxu0
    %v216 = vadd.f32 %v128, %v215
    %v217 = vpop.f32.mrb[0].mxu0
    %218 = vdwg.mxu0
    %219 = vst.msk [vmem:[#allocation2] sm:$0xff] %vm52, %v213
    %220 = vst.msk [vmem:[#allocation2 + $0x8] sm:$0xff] %vm52, %v216
    // Predicated region
    $region22: #{_mlp_forward_impl.1} parent=1 // pred_check
      _
    $region23: #{_mlp_forward_impl.1} parent=1 // pred_check_branch
      %222 = sbr.rel (0) target = $region25
    $region24: #{_mlp_forward_impl.1} parent=1 // pred_region
      %s224 = ssub.s32 256, 256
      %225 = vsyncadd [#allocation3], %s224
      %s226 = sshll.u32 [#allocation2], 4
      %s227 = int_to_ptr.vmem [resolvable:$true] %s226
      %232 = dma.vmem_to_hbm [thread:$0]  %s227, 256, %s5, [#allocation3], 128, 128, 8
    $region25: #{_mlp_forward_impl.1} parent=1 // pred_fallthru
      _
    // Predicated region
    $region26: #{_mlp_forward_impl.1} parent=1 // pred_check
      _
    $region27: #{_mlp_forward_impl.1} parent=1 // pred_check_branch
      %234 = sbr.rel (0) target = $region29
    $region28: #{_mlp_forward_impl.1} parent=1 // pred_region
      %235 = dma.done [#allocation3], 256
    $region29: #{_mlp_forward_impl.1} parent=1 // pred_fallthru
      _
    %236 = vsyncpa [#allocation3], 1

// kernel: _mlp_forward_impl.1
$region0: #{_mlp_forward_impl.1}
  #allocation0 [shape = 'u32[]', space=smem, size = 0x4, offset = 0x4, fixed_abs, tag = 'smem constant byte address 0x4 - core index']
  #allocation1 [shape = 'u32[144,128]{1,0:T(1,128)}', space=vmem, size = 0x12000, scoped, tag = 'internal scratch']
  %s0 = inlined_call_operand.vmem [shape: f32[16,32], index: 0, kind: input, shape index: {}]
  %s1 = inlined_call_operand.vmem [shape: bf16[32,128], index: 1, kind: input, shape index: {}]
  %s2 = inlined_call_operand.vmem [shape: f32[1,128], index: 2, kind: input, shape index: {}]
  %s3 = inlined_call_operand.vmem [shape: bf16[128,32], index: 3, kind: input, shape index: {}]
  %s4 = inlined_call_operand.vmem [shape: f32[1,32], index: 4, kind: input, shape index: {}]
  %s5 = inlined_call_operand.hbm [shape: f32[16,32], index: 5, kind: output, shape index: {}]
  %s6 = sld [smem:[#allocation0]]
  $region30: #{_mlp_forward_impl.1} parent=0
    _
  %s8 = ssub.s32 1, %s6
  %s9 = scalar_select 0, %s8, %s6
  $region1: #{_mlp_forward_impl.1} parent=0
    #allocation2 [shape = 'u8[8192]{0}', space=vmem, size = 0x2000, scoped, tag = 'output window, operand 0, single buffered']
    #allocation3 [shape = 's32[1]{0}', space=sflag, size = 0x4, scoped, tag = 'scoped memory for _mlp_forward_impl.1']
    %10 = vsyncpa [#allocation3], 0
    // Predicated region
    $region2: #{_mlp_forward_impl.1} parent=1 // pred_check
      _
    $region3: #{_mlp_forward_impl.1} parent=1 // pred_check_branch
      %12 = sbr.rel (0) target = $region5
    $region4: #{_mlp_forward_impl.1} parent=1 // pred_region
      _
    $region5: #{_mlp_forward_impl.1} parent=1 // pred_fallthru
      _
    // Predicated region
    $region6: #{_mlp_forward_impl.1} parent=1 // pred_check
      _
    $region7: #{_mlp_forward_impl.1} parent=1 // pred_check_branch
      %14 = sbr.rel (0) target = $region9
    $region8: #{_mlp_forward_impl.1} parent=1 // pred_region
      _
    $region9: #{_mlp_forward_impl.1} parent=1 // pred_fallthru
      _
    // Predicated region
    $region10: #{_mlp_forward_impl.1} parent=1 // pred_check
      _
    $region11: #{_mlp_forward_impl.1} parent=1 // pred_check_branch
      %16 = sbr.rel (0) target = $region13
    $region12: #{_mlp_forward_impl.1} parent=1 // pred_region
      _
    $region13: #{_mlp_forward_impl.1} parent=1 // pred_fallthru
      _
    // Predicated region
    $region14: #{_mlp_forward_impl.1} parent=1 // pred_check
      _
    $region15: #{_mlp_forward_impl.1} parent=1 // pred_check_branch
      %18 = sbr.rel (0) target = $region17
    $region16: #{_mlp_forward_impl.1} parent=1 // pred_region
      _
    $region17: #{_mlp_forward_impl.1} parent=1 // pred_fallthru
      _
    // Predicated region
    $region18: #{_mlp_forward_impl.1} parent=1 // pred_check
      _
    $region19: #{_mlp_forward_impl.1} parent=1 // pred_check_branch
      %20 = sbr.rel (0) target = $region21
    $region20: #{_mlp_forward_impl.1} parent=1 // pred_region
      _
    $region21: #{_mlp_forward_impl.1} parent=1 // pred_fallthru
      _
    %v26 = vld [vmem:[%s0] sm:$0xff]
    %v27 = vld [vmem:[%s0 + $0x8] sm:$0xff]
    %v28 = vpack.c.bf16 %v27, %v26
    %v29 = vld [vmem:[%s1] sm:$0xf]
    %v30 = vld [vmem:[%s1 + $0x4] sm:$0xf]
    %v31 = vld [vmem:[%s1 + $0x8] sm:$0xf]
    %v32 = vld [vmem:[%s1 + $0xc] sm:$0xf]
    %v33 = vld [vmem:[%s2] sm:$0x1]
    %v35 = vlaneseq
    %v36 = vshrl.u32 %v35, 7
    %v37 = vsub.s32 0, %v36
    %v38 = vrot.slane %v33, %v37
    %v44 = vunpack.c.l.b16 %v29
    %v45 = vunpack.c.l.b16 %v30
    %v46 = vunpack.c.l.b16 %v31
    %v47 = vunpack.c.l.b16 %v32
    %v48 = vpack.c.b16 %v45, %v44
    %v49 = vpack.c.b16 %v47, %v46
    %vm52 = vcmask 261120
    %v54 = vsel %vm52, %v28, 0
    %56 = vmatprep.subr.bf16.mxu0 0
    %57 = vmatpush1.bf16.msra.mxu0 %v48
    %58 = vmatprep.subr.bf16.mxu0 0
    %59 = vmatpush1.bf16.msra.mxu0 %v49
    %60 = vmatprep.subr.bf16.mxu0 0
    %61 = vmatpush1.bf16.msra.mxu0 0
    %62 = vmatprep.subr.bf16.mxu0 0
    %63 = vmatpush1.bf16.msra.mxu0 0
    %64 = vmatprep.subr.bf16.mxu0 0
    %65 = vmatpush1.bf16.msra.mxu0 0
    %66 = vmatprep.subr.bf16.mxu0 0
    %67 = vmatpush1.bf16.msra.mxu0 0
    %68 = vmatprep.subr.bf16.mxu0 0
    %69 = vmatpush1.bf16.msra.mxu0 0
    %70 = vmatprep.subr.bf16.mxu0 0
    %71 = vmatpush1.bf16.msra.mxu0 0
    %72 = vmatprep.subr.bf16.mxu0 0
    %73 = vmatpush1.bf16.msra.mxu0 0
    %74 = vmatprep.subr.bf16.mxu0 0
    %75 = vmatpush1.bf16.msra.mxu0 0
    %76 = vmatprep.subr.bf16.mxu0 0
    %77 = vmatpush1.bf16.msra.mxu0 0
    %78 = vmatprep.subr.bf16.mxu0 0
    %79 = vmatpush1.bf16.msra.mxu0 0
    %80 = vmatprep.subr.bf16.mxu0 0
    %81 = vmatpush1.bf16.msra.mxu0 0
    %82 = vmatprep.subr.bf16.mxu0 0
    %83 = vmatpush1.bf16.msra.mxu0 0
    %84 = vmatprep.subr.bf16.mxu0 0
    %85 = vmatpush1.bf16.msra.mxu0 0
    %86 = vmatprep.subr.bf16.mxu0 0
    %87 = vmatpush1.bf16.msra.mxu0 0
    %88 = vmatprep.mubr.bf16.mxu0 0
    %89 = vmatmul.mubr.bf16.gmra.mrb[0].mxu0 %v54
    %v90 = vpop.f32.mrb[0].mxu0
    %v91 = vadd.f32 %v38, %v90
    %v92 = vpop.f32.mrb[0].mxu0
    %v93 = vpop.f32.mrb[0].mxu0
    %v94 = vadd.f32 %v38, %v93
    %v95 = vpop.f32.mrb[0].mxu0
    %96 = vdwg.mxu0
    %v97 = vpack.c.bf16 %v94, %v91
    %v98 = vmul.bf16 %v97, 1056980736
    %v99 = vmul.bf16 %v97, %v97
    %v100 = vmul.bf16 %v99, %v97
    %v101 = vmul.bf16 %v100, 1027030327
    %v102 = vadd.bf16 %v97, %v101
    %v103 = vmul.bf16 %v102, 1061961548
    %v104 = vtanh.bf16.pop %v103
    %v105 = vadd.bf16 %v104, 1065369472
    %v106 = vmul.bf16 %v98, %v105
    %v107 = vld [vmem:[%s3] sm:$0xf]
    %v108 = vld [vmem:[%s3 + $0x4] sm:$0xf]
    %v109 = vld [vmem:[%s3 + $0x8] sm:$0xf]
    %v110 = vld [vmem:[%s3 + $0xc] sm:$0xf]
    %v111 = vld [vmem:[%s3 + $0x10] sm:$0xf]
    %v112 = vld [vmem:[%s3 + $0x14] sm:$0xf]
    %v113 = vld [vmem:[%s3 + $0x18] sm:$0xf]
    %v114 = vld [vmem:[%s3 + $0x1c] sm:$0xf]
    %v115 = vld [vmem:[%s3 + $0x20] sm:$0xf]
    %v116 = vld [vmem:[%s3 + $0x24] sm:$0xf]
    %v117 = vld [vmem:[%s3 + $0x28] sm:$0xf]
    %v118 = vld [vmem:[%s3 + $0x2c] sm:$0xf]
    %v119 = vld [vmem:[%s3 + $0x30] sm:$0xf]
    %v120 = vld [vmem:[%s3 + $0x34] sm:$0xf]
    %v121 = vld [vmem:[%s3 + $0x38] sm:$0xf]
    %v122 = vld [vmem:[%s3 + $0x3c] sm:$0xf]
    %v123 = vld [vmem:[%s4] sm:$0x1]
    %v125 = vlaneseq
    %v126 = vshrl.u32 %v125, 7
    %v127 = vsub.s32 0, %v126
    %v128 = vrot.slane %v123, %v127
    %v146 = vunpack.c.l.b16 %v107
    %v147 = vunpack.c.l.b16 %v108
    %v148 = vunpack.c.l.b16 %v109
    %v149 = vunpack.c.l.b16 %v110
    %v150 = vunpack.c.l.b16 %v111
    %v151 = vunpack.c.l.b16 %v112
    %v152 = vunpack.c.l.b16 %v113
    %v153 = vunpack.c.l.b16 %v114
    %v154 = vunpack.c.l.b16 %v115
    %v155 = vunpack.c.l.b16 %v116
    %v156 = vunpack.c.l.b16 %v117
    %v157 = vunpack.c.l.b16 %v118
    %v158 = vunpack.c.l.b16 %v119
    %v159 = vunpack.c.l.b16 %v120
    %v160 = vunpack.c.l.b16 %v121
    %v161 = vunpack.c.l.b16 %v122
    %v162 = vpack.c.b16 %v147, %v146
    %v163 = vpack.c.b16 %v149, %v148
    %v164 = vpack.c.b16 %v151, %v150
    %v165 = vpack.c.b16 %v153, %v152
    %v166 = vpack.c.b16 %v155, %v154
    %v167 = vpack.c.b16 %v157, %v156
    %v168 = vpack.c.b16 %v159, %v158
    %v169 = vpack.c.b16 %v161, %v160
    %178 = vmatprep.subr.bf16.mxu0 0
    %179 = vmatpush1.bf16.msra.mxu0 %v162
    %180 = vmatprep.subr.bf16.mxu0 0
    %181 = vmatpush1.bf16.msra.mxu0 %v163
    %182 = vmatprep.subr.bf16.mxu0 0
    %183 = vmatpush1.bf16.msra.mxu0 %v164
    %184 = vmatprep.subr.bf16.mxu0 0
    %185 = vmatpush1.bf16.msra.mxu0 %v165
    %186 = vmatprep.subr.bf16.mxu0 0
    %187 = vmatpush1.bf16.msra.mxu0 %v166
    %188 = vmatprep.subr.bf16.mxu0 0
    %189 = vmatpush1.bf16.msra.mxu0 %v167
    %190 = vmatprep.subr.bf16.mxu0 0
    %191 = vmatpush1.bf16.msra.mxu0 %v168
    %192 = vmatprep.subr.bf16.mxu0 0
    %193 = vmatpush1.bf16.msra.mxu0 %v169
    %194 = vmatprep.subr.bf16.mxu0 0
    %195 = vmatpush1.bf16.msra.mxu0 0
    %196 = vmatprep.subr.bf16.mxu0 0
    %197 = vmatpush1.bf16.msra.mxu0 0
    %198 = vmatprep.subr.bf16.mxu0 0
    %199 = vmatpush1.bf16.msra.mxu0 0
    %200 = vmatprep.subr.bf16.mxu0 0
    %201 = vmatpush1.bf16.msra.mxu0 0
    %202 = vmatprep.subr.bf16.mxu0 0
    %203 = vmatpush1.bf16.msra.mxu0 0
    %204 = vmatprep.subr.bf16.mxu0 0
    %205 = vmatpush1.bf16.msra.mxu0 0
    %206 = vmatprep.subr.bf16.mxu0 0
    %207 = vmatpush1.bf16.msra.mxu0 0
    %208 = vmatprep.subr.bf16.mxu0 0
    %209 = vmatpush1.bf16.msra.mxu0 0
    %210 = vmatprep.mubr.bf16.mxu0 0
    %211 = vmatmul.mubr.bf16.gmra.mrb[0].mxu0 %v106
    %v212 = vpop.f32.mrb[0].mxu0
    %v213 = vadd.f32 %v128, %v212
    %v214 = vpop.f32.mrb[0].mxu0
    %v215 = vpop.f32.mrb[0].mxu0
    %v216 = vadd.f32 %v128, %v215
    %v217 = vpop.f32.mrb[0].mxu0
    %218 = vdwg.mxu0
    %219 = vst.msk [vmem:[#allocation2] sm:$0xff] %vm52, %v213
    %220 = vst.msk [vmem:[#allocation2 + $0x8] sm:$0xff] %vm52, %v216
    // Predicated region
    $region22: #{_mlp_forward_impl.1} parent=1 // pred_check
      _
    $region23: #{_mlp_forward_impl.1} parent=1 // pred_check_branch
      %222 = sbr.rel (0) target = $region25
    $region24: #{_mlp_forward_impl.1} parent=1 // pred_region
      %s224 = ssub.s32 256, 256
      %225 = vsyncadd [#allocation3], %s224
      %s226 = sshll.u32 [#allocation2], 4
      %s227 = int_to_ptr.vmem [resolvable:$true] %s226
      %232 = dma.vmem_to_hbm [thread:$0]  %s227, 256, %s5, [#allocation3], 128, 128, 8
    $region25: #{_mlp_forward_impl.1} parent=1 // pred_fallthru
      _
    // Predicated region
    $region26: #{_mlp_forward_impl.1} parent=1 // pred_check
      _
    $region27: #{_mlp_forward_impl.1} parent=1 // pred_check_branch
      %234 = sbr.rel (0) target = $region29
    $region28: #{_mlp_forward_impl.1} parent=1 // pred_region
      %235 = dma.done [#allocation3], 256
    $region29: #{_mlp_forward_impl.1} parent=1 // pred_fallthru
      _
    %236 = vsyncpa [#allocation3], 1

</llo_original>
